<compile_context>
chip_gen: v7x
topology: tpu7x:2x2x1
jax: 0.10.0
libtpu: 0.0.40
codegen_flags: <defaults>
</compile_context>

<pallas_src>
import jax
import jax.numpy as jnp
from jax import lax
from jax.experimental import pallas as pl
from jax.experimental.pallas import tpu as pltpu


def _linear_relu_kernel(x_ref, w_ref, b_ref, oT_ref):
    # x_ref: [tb, in_dim]  (untransposed batch tile)
    # w_ref: [out_dim, in_dim]  (PyTorch nn.Linear weight layout)
    # b_ref: [out_dim, 1]
    # oT_ref: [out_dim, tb]  (lane-dense: batch on the 128-lane axis)
    #
    # Contract in_dim of both operands: z = W @ x^T  -> [out_dim, tb]
    z = lax.dot_general(
        w_ref[...], x_ref[...],
        dimension_numbers=(((1,), (1,)), ((), ())),
        preferred_element_type=jnp.float32,
    )
    z = z + b_ref[...]                       # broadcast [out_dim, 1] over lanes
    # TODO(synk): training-mode Dropout(p=0.1) omitted (eval-mode identity);
    #             would need pltpu.prng_seed + pltpu.prng_random_bits for a mask.
    oT_ref[...] = jnp.maximum(z, 0.0).astype(oT_ref.dtype)


def new_front_model_forward(x, w, b, *, block_b=32768):
    """NewFrontModel eval forward.

    x: [B, in_dim] float32
    w: [out_dim, in_dim] float32   (PyTorch nn.Linear weight layout)
    b: [out_dim] float32
    returns: [B, out_dim] float32
    """
    B, in_dim = x.shape
    out_dim = w.shape[0]
    b_col = b.reshape(out_dim, 1)            # bias as a column (broadcast on lanes)

    # Batch (lane) tile: large, and a multiple of 128 whenever we actually tile.
    if B > block_b:
        tb = max(128, (block_b // 128) * 128)
    else:
        tb = B                                # single block == full array dims

    grid = (pl.cdiv(B, tb),)                  # ragged tail masked by Pallas

    cost = pl.CostEstimate(
        flops=2 * B * in_dim * out_dim,
        transcendentals=0,
        bytes_accessed=4 * (B * in_dim + out_dim * in_dim
                            + out_dim + out_dim * B),
    )

    yT = pl.pallas_call(
        _linear_relu_kernel,
        out_shape=jax.ShapeDtypeStruct((out_dim, B), jnp.float32),
        grid=grid,
        in_specs=[
            pl.BlockSpec((tb, in_dim), lambda i: (i, 0)),        # x batch tile (no transpose)
            pl.BlockSpec((out_dim, in_dim), lambda i: (0, 0)),   # weight (VMEM-resident)
            pl.BlockSpec((out_dim, 1), lambda i: (0, 0)),        # bias   (VMEM-resident)
        ],
        out_specs=pl.BlockSpec((out_dim, tb), lambda i: (0, i)), # lane-dense store
        compiler_params=pltpu.CompilerParams(
            dimension_semantics=("parallel",),
            vmem_limit_bytes=48 << 20,
        ),
        cost_estimate=cost,
    )(x, w, b_col)

    # Tiny relayout: [out_dim, B] -> [B, out_dim] (out_dim bytes << in_dim bytes).
    return jnp.transpose(yT)


def init_params(key, in_dim, out_dim):
    """PyTorch nn.Linear-style init: U(-1/sqrt(fan_in), 1/sqrt(fan_in))."""
    k_w, k_b = jax.random.split(key)
    bound = 1.0 / jnp.sqrt(in_dim)
    w = jax.random.uniform(k_w, (out_dim, in_dim), jnp.float32, -bound, bound)
    b = jax.random.uniform(k_b, (out_dim,), jnp.float32, -bound, bound)
    return w, b


def _reference(x, w, b):
    # eval-mode forward: Linear -> Dropout(identity) -> ReLU
    return jnp.maximum(x @ w.T + b, 0.0)


if __name__ == "__main__":
    key = jax.random.PRNGKey(0)
    k_x1, k_x2, k_p = jax.random.split(key, 3)

    in_dim, out_dim = 32, 4
    w, b = init_params(k_p, in_dim, out_dim)

    # Small batch: single full-array block (tb = B path).
    x_small = jax.random.normal(k_x1, (8, in_dim), jnp.float32)
    y_small = jax.block_until_ready(new_front_model_forward(x_small, w, b))
    assert y_small.shape == (8, out_dim)
    assert jnp.allclose(y_small, _reference(x_small, w, b), atol=1e-5), \
        "small-batch mismatch vs reference"

    # Larger, non-multiple batch: exercises the lane-tiled grid with a ragged
    # (masked) final block — no jnp.pad copy of the input.
    x_big = jax.random.normal(k_x2, (200, in_dim), jnp.float32)
    y_big = jax.block_until_ready(new_front_model_forward(x_big, w, b, block_b=128))
    assert y_big.shape == (200, out_dim)
    assert jnp.allclose(y_big, _reference(x_big, w, b), atol=1e-5), \
        "tiled-batch mismatch vs reference"

    print("KERNEL_OK")
</pallas_src>

<mosaic_0001>
module attributes {stable_mosaic.version = 11 : i64} {
  func.func @_linear_relu_kernel(%arg0: i32, %arg1: memref<8x32xf32, #tpu.memory_space<vmem>>, %arg2: memref<4x32xf32, #tpu.memory_space<vmem>>, %arg3: memref<4x1xf32, #tpu.memory_space<vmem>>, %arg4: memref<4x8xf32, #tpu.memory_space<vmem>>) attributes {dimension_semantics = [#tpu.dimension_semantics<parallel>], iteration_bounds = array<i64: 1>, scalar_prefetch = 0 : i64, scratch_operands = 0 : i64, tpu.core_type = #tpu.core_type<tc>, window_params = [{transform_indices = @transform_0, window_bounds = array<i64: 8, 32>}, {pipeline_mode = #tpu.pipeline_mode<synchronous>, transform_indices = @transform_1, window_bounds = array<i64: 4, 32>}, {pipeline_mode = #tpu.pipeline_mode<synchronous>, transform_indices = @transform_2, window_bounds = array<i64: 4, 1>}, {transform_indices = @transform_3, window_bounds = array<i64: 4, 8>}]} {
    %c0 = arith.constant 0 : index
    %c0_0 = arith.constant 0 : index
    %0 = vector.load %arg2[%c0, %c0_0] : memref<4x32xf32, #tpu.memory_space<vmem>>, vector<4x32xf32>
    %c0_1 = arith.constant 0 : index
    %c0_2 = arith.constant 0 : index
    %1 = vector.load %arg1[%c0_1, %c0_2] : memref<8x32xf32, #tpu.memory_space<vmem>>, vector<8x32xf32>
    %cst = arith.constant dense<0.000000e+00> : vector<4x8xf32>
    %2 = tpu.matmul %0, %1, %cst {dimension_numbers = #tpu.dot_dimension_numbers<[1], [1], [0], [0], [0, 0, 1, 0], [], []>} : vector<4x32xf32>, vector<8x32xf32>, vector<4x8xf32> -> vector<4x8xf32>
    %c0_3 = arith.constant 0 : index
    %c0_4 = arith.constant 0 : index
    %3 = vector.load %arg3[%c0_3, %c0_4] : memref<4x1xf32, #tpu.memory_space<vmem>>, vector<4x1xf32>
    %4 = vector.broadcast %3 : vector<4x1xf32> to vector<4x8xf32>
    %5 = arith.addf %2, %4 : vector<4x8xf32>
    %cst_5 = arith.constant 0.000000e+00 : f32
    %6 = vector.broadcast %cst_5 : f32 to vector<4x8xf32>
    %7 = arith.maximumf %5, %6 : vector<4x8xf32>
    %c0_6 = arith.constant 0 : index
    %c0_7 = arith.constant 0 : index
    %8 = vector.load %arg4[%c0_6, %c0_7] : memref<4x8xf32, #tpu.memory_space<vmem>>, vector<4x8xf32>
    tpu.vector_store %arg4[%c0_6, %c0_7], %7 {strides = array<i32>} : memref<4x8xf32, #tpu.memory_space<vmem>>, vector<4x8xf32>,
    return
  }
  func.func @transform_0(%arg0: i32) -> (i32, i32) {
    %c0_i32 = arith.constant 0 : i32
    %c0_i32_0 = arith.constant 0 : i32
    return %arg0, %c0_i32 : i32, i32
  }
  func.func @transform_1(%arg0: i32) -> (i32, i32) {
    %c0_i32 = arith.constant 0 : i32
    %c0_i32_0 = arith.constant 0 : i32
    %c0_i32_1 = arith.constant 0 : i32
    return %c0_i32, %c0_i32_0 : i32, i32
  }
  func.func @transform_2(%arg0: i32) -> (i32, i32) {
    %c0_i32 = arith.constant 0 : i32
    %c0_i32_0 = arith.constant 0 : i32
    %c0_i32_1 = arith.constant 0 : i32
    return %c0_i32, %c0_i32_0 : i32, i32
  }
  func.func @transform_3(%arg0: i32) -> (i32, i32) {
    %c0_i32 = arith.constant 0 : i32
    %c0_i32_0 = arith.constant 0 : i32
    return %c0_i32, %arg0 : i32, i32
  }
}

</mosaic_0001>

<llo_original>
// kernel: tpu_custom_call.1
$region0: #{tpu_custom_call.1}
  #allocation0 [shape = 'u32[]', space=smem, size = 0x4, offset = 0x4, fixed_abs, tag = 'smem constant byte address 0x4 - core index']
  #allocation1 [shape = 'u32[144,128]{1,0:T(1,128)}', space=vmem, size = 0x12000, scoped, tag = 'internal scratch']
  %s0 = inlined_call_operand.hbm [shape: f32[8,32], index: 0, kind: input, shape index: {}]
  %s1 = inlined_call_operand.vmem [shape: f32[4,32], index: 1, kind: input, shape index: {}]
  %s2 = inlined_call_operand.vmem [shape: f32[4,1], index: 2, kind: input, shape index: {}]
  %s3 = inlined_call_operand.hbm [shape: f32[4,8], index: 3, kind: output, shape index: {}]
  %s4 = sld [smem:[#allocation0]]
  $region26: #{tpu_custom_call.1} parent=0
    _
  %s6 = ssub.s32 1, %s4
  %s7 = scalar_select 0, %s6, %s4
  $region1: #{tpu_custom_call.1} parent=0
    #allocation2 [shape = 'u8[4096]{0}', space=vmem, size = 0x1000, scoped, tag = 'input window, operand 0, single buffered']
    #allocation3 [shape = 's32[1]{0}', space=sflag, size = 0x4, scoped, tag = 'scoped memory for tpu_custom_call.1']
    #allocation4 [shape = 's32[1]{0}', space=sflag, size = 0x4, scoped, tag = 'scoped memory for tpu_custom_call.1']
    #allocation5 [shape = 'u8[2048]{0}', space=vmem, size = 0x800, scoped, tag = 'output window, operand 0, single buffered']
    %8 = vsyncpa [#allocation3], 0
    %9 = vsyncpa [#allocation4], 0
    // Predicated region
    $region2: #{tpu_custom_call.1} parent=1 // pred_check
      _
    $region3: #{tpu_custom_call.1} parent=1 // pred_check_branch
      %11 = sbr.rel (0) target = $region5
    $region4: #{tpu_custom_call.1} parent=1 // pred_region
      %s13 = ssub.s32 128, 128
      %14 = vsyncadd [#allocation3], %s13
      %s16 = sshll.u32 [#allocation2], 4
      %s17 = int_to_ptr.vmem [resolvable:$true] %s16
      %19 = dma.hbm_to_vmem [thread:$0]  %s0, 128, %s17, [#allocation3]
    $region5: #{tpu_custom_call.1} parent=1 // pred_fallthru
      _
    // Predicated region
    $region6: #{tpu_custom_call.1} parent=1 // pred_check
      _
    $region7: #{tpu_custom_call.1} parent=1 // pred_check_branch
      %21 = sbr.rel (0) target = $region9
    $region8: #{tpu_custom_call.1} parent=1 // pred_region
      _
    $region9: #{tpu_custom_call.1} parent=1 // pred_fallthru
      _
    // Predicated region
    $region10: #{tpu_custom_call.1} parent=1 // pred_check
      _
    $region11: #{tpu_custom_call.1} parent=1 // pred_check_branch
      %23 = sbr.rel (0) target = $region13
    $region12: #{tpu_custom_call.1} parent=1 // pred_region
      _
    $region13: #{tpu_custom_call.1} parent=1 // pred_fallthru
      _
    // Predicated region
    $region14: #{tpu_custom_call.1} parent=1 // pred_check
      _
    $region15: #{tpu_custom_call.1} parent=1 // pred_check_branch
      %25 = sbr.rel (0) target = $region17
    $region16: #{tpu_custom_call.1} parent=1 // pred_region
      %26 = dma.done [#allocation3], 128
    $region17: #{tpu_custom_call.1} parent=1 // pred_fallthru
      _
    %v27 = vld [vmem:[%s1] sm:$0xf]
    %v28 = vld [vmem:[#allocation2] sm:$0xff]
    %v29 = vld [vmem:[%s2] sm:$0xf]
    %31 = vset.pattern.permute.xlu0 0
    %32 = vperm.xlu0 %31, %v29
    %v33 = vpop.permute.xlu0 %32
    %vm35 = vcmask 261120
    %v37 = vsel %vm35, %v27, 0
    %v40 = vsel %vm35, %v28, 0
    %42 = vmatprep.subr.mxu0 0.0
    %43 = vmatpush1.xpose.msra.mxu0 %v40
    %44 = vmatprep.subr.mxu0 0.0
    %45 = vmatpush1.xpose.msra.mxu0 0.0
    %46 = vmatprep.subr.mxu0 0.0
    %47 = vmatpush1.xpose.msra.mxu0 0.0
    %48 = vmatprep.subr.mxu0 0.0
    %49 = vmatpush1.xpose.msra.mxu0 0.0
    %50 = vmatprep.subr.mxu0 0.0
    %51 = vmatpush1.xpose.msra.mxu0 0.0
    %52 = vmatprep.subr.mxu0 0.0
    %53 = vmatpush1.xpose.msra.mxu0 0.0
    %54 = vmatprep.subr.mxu0 0.0
    %55 = vmatpush1.xpose.msra.mxu0 0.0
    %56 = vmatprep.subr.mxu0 0.0
    %57 = vmatpush1.xpose.msra.mxu0 0.0
    %58 = vmatprep.subr.mxu0 0.0
    %59 = vmatpush1.xpose.msra.mxu0 0.0
    %60 = vmatprep.subr.mxu0 0.0
    %61 = vmatpush1.xpose.msra.mxu0 0.0
    %62 = vmatprep.subr.mxu0 0.0
    %63 = vmatpush1.xpose.msra.mxu0 0.0
    %64 = vmatprep.subr.mxu0 0.0
    %65 = vmatpush1.xpose.msra.mxu0 0.0
    %66 = vmatprep.subr.mxu0 0.0
    %67 = vmatpush1.xpose.msra.mxu0 0.0
    %68 = vmatprep.subr.mxu0 0.0
    %69 = vmatpush1.xpose.msra.mxu0 0.0
    %70 = vmatprep.subr.mxu0 0.0
    %71 = vmatpush1.xpose.msra.mxu0 0.0
    %72 = vmatprep.subr.mxu0 0.0
    %73 = vmatpush1.xpose.msra.mxu0 0.0
    %74 = vmatprep.subr.mxu0 0.0
    %75 = vmatpush1.xpose.msra.mxu0 0.0
    %76 = vmatprep.subr.mxu0 0.0
    %77 = vmatpush1.xpose.msra.mxu0 0.0
    %78 = vmatprep.subr.mxu0 0.0
    %79 = vmatpush1.xpose.msra.mxu0 0.0
    %80 = vmatprep.subr.mxu0 0.0
    %81 = vmatpush1.xpose.msra.mxu0 0.0
    %82 = vmatprep.subr.mxu0 0.0
    %83 = vmatpush1.xpose.msra.mxu0 0.0
    %84 = vmatprep.subr.mxu0 0.0
    %85 = vmatpush1.xpose.msra.mxu0 0.0
    %86 = vmatprep.subr.mxu0 0.0
    %87 = vmatpush1.xpose.msra.mxu0 0.0
    %88 = vmatprep.subr.mxu0 0.0
    %89 = vmatpush1.xpose.msra.mxu0 0.0
    %90 = vmatprep.subr.mxu0 0.0
    %91 = vmatpush1.xpose.msra.mxu0 0.0
    %92 = vmatprep.subr.mxu0 0.0
    %93 = vmatpush1.xpose.msra.mxu0 0.0
    %94 = vmatprep.subr.mxu0 0.0
    %95 = vmatpush1.xpose.msra.mxu0 0.0
    %96 = vmatprep.subr.mxu0 0.0
    %97 = vmatpush1.xpose.msra.mxu0 0.0
    %98 = vmatprep.subr.mxu0 0.0
    %99 = vmatpush1.xpose.msra.mxu0 0.0
    %100 = vmatprep.subr.mxu0 0.0
    %101 = vmatpush1.xpose.msra.mxu0 0.0
    %102 = vmatprep.subr.mxu0 0.0
    %103 = vmatpush1.xpose.msra.mxu0 0.0
    %104 = vmatprep.subr.mxu0 0.0
    %105 = vmatpush1.xpose.msra.mxu0 0.0
    %106 = vmatprep.mubr.f32.mxu0 0.0
    %107 = vmatmul.mubr.f32.gmra.mrb[0].mxu0 %v37
    %v108 = vpop.f32.mrb[0].mxu0
    %v109 = vadd.f32 %v33, %v108
    %v110 = vpop.f32.mrb[0].mxu0
    %111 = vdwg.mxu0
    %v112 = vmax.f32 %v109, 0.0
    %vm113 = vcmask 60416
    %114 = vst.msk [vmem:[#allocation5] sm:$0xf] %vm113, %v112
    // Predicated region
    $region18: #{tpu_custom_call.1} parent=1 // pred_check
      _
    $region19: #{tpu_custom_call.1} parent=1 // pred_check_branch
      %116 = sbr.rel (0) target = $region21
    $region20: #{tpu_custom_call.1} parent=1 // pred_region
      %s118 = ssub.s32 64, 64
      %119 = vsyncadd [#allocation4], %s118
      %s121 = sshll.u32 [#allocation5], 4
      %s122 = int_to_ptr.vmem [resolvable:$true] %s121
      %124 = dma.vmem_to_hbm [thread:$0]  %s122, 64, %s3, [#allocation4]
    $region21: #{tpu_custom_call.1} parent=1 // pred_fallthru
      _
    // Predicated region
    $region22: #{tpu_custom_call.1} parent=1 // pred_check
      _
    $region23: #{tpu_custom_call.1} parent=1 // pred_check_branch
      %126 = sbr.rel (0) target = $region25
    $region24: #{tpu_custom_call.1} parent=1 // pred_region
      %127 = dma.done [#allocation4], 64
    $region25: #{tpu_custom_call.1} parent=1 // pred_fallthru
      _
    %128 = vsyncpa [#allocation3], 1
    %129 = vsyncpa [#allocation4], 1

</llo_original>
